<compile_context>
chip_gen: v7x
topology: tpu7x:2x2x1
jax: 0.10.0
libtpu: 0.0.40
codegen_flags: <defaults>
</compile_context>

<pallas_src>
import jax
import jax.numpy as jnp
from jax.experimental import pallas as pl
from jax.experimental.pallas import tpu as pltpu

_LANES = 128


def _add_kernel(a_ref, b_ref, o_ref):
    # Elementwise add on the full VMEM-resident block (VPU).
    o_ref[...] = a_ref[...] + b_ref[...]


def pallas_add(x83, x77):
    """Elementwise add (operator.add) of two same-shaped tensors."""
    assert x83.shape == x77.shape and x83.dtype == x77.dtype
    orig_shape = x83.shape

    total = 1
    for d in orig_shape:
        total *= d

    # Lane-dense flattening: last dim == 128 so every vreg lane carries data
    # and stores are full-width (no vst.msk).  Pad only if total is not a
    # multiple of 128 (not the case for the reference 1x80x28x28 input).
    pad = (-total) % _LANES
    a1d = x83.reshape(total)
    b1d = x77.reshape(total)
    if pad:
        a1d = jnp.pad(a1d, (0, pad))
        b1d = jnp.pad(b1d, (0, pad))
    rows = (total + pad) // _LANES
    a2d = a1d.reshape(rows, _LANES)
    b2d = b1d.reshape(rows, _LANES)

    # Single block == full array, kept entirely in VMEM (no grid, no tiling).
    block = pl.BlockSpec(
        (rows, _LANES), lambda: (0, 0), memory_space=pltpu.VMEM
    )

    out2d = pl.pallas_call(
        _add_kernel,
        out_shape=jax.ShapeDtypeStruct((rows, _LANES), a2d.dtype),
        in_specs=[block, block],
        out_specs=block,
    )(a2d, b2d)

    out1d = out2d.reshape(rows * _LANES)
    if pad:
        out1d = out1d[:total]
    return out1d.reshape(orig_shape)


if __name__ == "__main__":
    key = jax.random.PRNGKey(0)
    k1, k2 = jax.random.split(key)
    shape = (1, 80, 28, 28)  # matches the PyTorch module's inputs
    x83 = jax.random.normal(k1, shape, dtype=jnp.float32)
    x77 = jax.random.normal(k2, shape, dtype=jnp.float32)

    out = pallas_add(x83, x77)
    jax.block_until_ready(out)

    # correctness check against plain JAX
    ref = x83 + x77
    assert out.shape == ref.shape
    assert jnp.allclose(out, ref, atol=1e-6, rtol=1e-6)

    print("KERNEL_OK")
</pallas_src>

<mosaic_0001>
module attributes {stable_mosaic.version = 11 : i64} {
  func.func @_add_kernel(%arg0: memref<490x128xf32, #tpu.memory_space<vmem>>, %arg1: memref<490x128xf32, #tpu.memory_space<vmem>>, %arg2: memref<490x128xf32, #tpu.memory_space<vmem>>) attributes {dimension_semantics = [], scalar_prefetch = 0 : i64, scratch_operands = 0 : i64, tpu.core_type = #tpu.core_type<tc>} {
    %c0 = arith.constant 0 : index
    %c0_0 = arith.constant 0 : index
    %0 = vector.load %arg0[%c0, %c0_0] : memref<490x128xf32, #tpu.memory_space<vmem>>, vector<490x128xf32>
    %c0_1 = arith.constant 0 : index
    %c0_2 = arith.constant 0 : index
    %1 = vector.load %arg1[%c0_1, %c0_2] : memref<490x128xf32, #tpu.memory_space<vmem>>, vector<490x128xf32>
    %2 = arith.addf %0, %1 : vector<490x128xf32>
    %c0_3 = arith.constant 0 : index
    %c0_4 = arith.constant 0 : index
    %3 = vector.load %arg2[%c0_3, %c0_4] : memref<490x128xf32, #tpu.memory_space<vmem>>, vector<490x128xf32>
    tpu.vector_store %arg2[%c0_3, %c0_4], %2 {strides = array<i32>} : memref<490x128xf32, #tpu.memory_space<vmem>>, vector<490x128xf32>,
    return
  }
}

</mosaic_0001>

<llo_original>
// kernel: tpu_custom_call.1
$region0: #{tpu_custom_call.1}
  #allocation0 [shape = 'u32[]', space=smem, size = 0x4, offset = 0x4, fixed_abs, tag = 'smem constant byte address 0x4 - core index']
  #allocation1 [shape = 'u32[144,128]{1,0:T(1,128)}', space=vmem, size = 0x12000, scoped, tag = 'internal scratch']
  %s0 = inlined_call_operand.hbm [shape: f32[490,128], index: 0, kind: input, shape index: {}]
  %s1 = inlined_call_operand.hbm [shape: f32[490,128], index: 1, kind: input, shape index: {}]
  %s2 = inlined_call_operand.hbm [shape: f32[490,128], index: 2, kind: output, shape index: {}]
  %s3 = sld [smem:[#allocation0]]
  $region26: #{tpu_custom_call.1} parent=0
    _
  %s5 = ssub.s32 1, %s3
  %s6 = scalar_select 0, %s5, %s3
  $region1: #{tpu_custom_call.1} parent=0
    #allocation2 [shape = 'u8[253952]{0}', space=vmem, size = 0x3e000, scoped, tag = 'input window, operand 0, single buffered']
    #allocation3 [shape = 's32[1]{0}', space=sflag, size = 0x4, scoped, tag = 'scoped memory for tpu_custom_call.1']
    #allocation4 [shape = 's32[1]{0}', space=sflag, size = 0x4, scoped, tag = 'scoped memory for tpu_custom_call.1']
    #allocation5 [shape = 'u8[253952]{0}', space=vmem, size = 0x3e000, scoped, tag = 'input window, operand 1, single buffered']
    #allocation6 [shape = 's32[1]{0}', space=sflag, size = 0x4, scoped, tag = 'scoped memory for tpu_custom_call.1']
    #allocation7 [shape = 'u8[253952]{0}', space=vmem, size = 0x3e000, scoped, tag = 'output window, operand 0, single buffered']
    %7 = vsyncpa [#allocation3], 0
    %8 = vsyncpa [#allocation6], 0
    %9 = vsyncpa [#allocation4], 0
    // Predicated region
    $region2: #{tpu_custom_call.1} parent=1 // pred_check
      _
    $region3: #{tpu_custom_call.1} parent=1 // pred_check_branch
      %11 = sbr.rel (0) target = $region5
    $region4: #{tpu_custom_call.1} parent=1 // pred_region
      %s13 = ssub.s32 7936, 7936
      %14 = vsyncadd [#allocation3], %s13
      %s15 = sshll.u32 [#allocation2], 4
      %s16 = int_to_ptr.vmem [resolvable:$true] %s15
      %21 = dma.hbm_to_vmem [thread:$0]  %s0, 7936, %s16, [#allocation3], 128, 128, 8
    $region5: #{tpu_custom_call.1} parent=1 // pred_fallthru
      _
    // Predicated region
    $region6: #{tpu_custom_call.1} parent=1 // pred_check
      _
    $region7: #{tpu_custom_call.1} parent=1 // pred_check_branch
      %23 = sbr.rel (0) target = $region9
    $region8: #{tpu_custom_call.1} parent=1 // pred_region
      %s25 = ssub.s32 7936, 7936
      %26 = vsyncadd [#allocation6], %s25
      %s27 = sshll.u32 [#allocation5], 4
      %s28 = int_to_ptr.vmem [resolvable:$true] %s27
      %33 = dma.hbm_to_vmem [thread:$0]  %s1, 7936, %s28, [#allocation6], 128, 128, 8
    $region9: #{tpu_custom_call.1} parent=1 // pred_fallthru
      _
    // Predicated region
    $region10: #{tpu_custom_call.1} parent=1 // pred_check
      _
    $region11: #{tpu_custom_call.1} parent=1 // pred_check_branch
      %35 = sbr.rel (0) target = $region13
    $region12: #{tpu_custom_call.1} parent=1 // pred_region
      %36 = dma.done [#allocation3], 7936
    $region13: #{tpu_custom_call.1} parent=1 // pred_fallthru
      _
    // Predicated region
    $region14: #{tpu_custom_call.1} parent=1 // pred_check
      _
    $region15: #{tpu_custom_call.1} parent=1 // pred_check_branch
      %38 = sbr.rel (0) target = $region17
    $region16: #{tpu_custom_call.1} parent=1 // pred_region
      %39 = dma.done [#allocation6], 7936
    $region17: #{tpu_custom_call.1} parent=1 // pred_fallthru
      _
    %v40 = vld [vmem:[#allocation2] sm:$0xff]
    %v41 = vld [vmem:[#allocation2 + $0x8] sm:$0xff]
    %v42 = vld [vmem:[#allocation2 + $0x10] sm:$0xff]
    %v43 = vld [vmem:[#allocation2 + $0x18] sm:$0xff]
    %v44 = vld [vmem:[#allocation2 + $0x20] sm:$0xff]
    %v45 = vld [vmem:[#allocation2 + $0x28] sm:$0xff]
    %v46 = vld [vmem:[#allocation2 + $0x30] sm:$0xff]
    %v47 = vld [vmem:[#allocation2 + $0x38] sm:$0xff]
    %v48 = vld [vmem:[#allocation2 + $0x40] sm:$0xff]
    %v49 = vld [vmem:[#allocation2 + $0x48] sm:$0xff]
    %v50 = vld [vmem:[#allocation2 + $0x50] sm:$0xff]
    %v51 = vld [vmem:[#allocation2 + $0x58] sm:$0xff]
    %v52 = vld [vmem:[#allocation2 + $0x60] sm:$0xff]
    %v53 = vld [vmem:[#allocation2 + $0x68] sm:$0xff]
    %v54 = vld [vmem:[#allocation2 + $0x70] sm:$0xff]
    %v55 = vld [vmem:[#allocation2 + $0x78] sm:$0xff]
    %v56 = vld [vmem:[#allocation2 + $0x80] sm:$0xff]
    %v57 = vld [vmem:[#allocation2 + $0x88] sm:$0xff]
    %v58 = vld [vmem:[#allocation2 + $0x90] sm:$0xff]
    %v59 = vld [vmem:[#allocation2 + $0x98] sm:$0xff]
    %v60 = vld [vmem:[#allocation2 + $0xa0] sm:$0xff]
    %v61 = vld [vmem:[#allocation2 + $0xa8] sm:$0xff]
    %v62 = vld [vmem:[#allocation2 + $0xb0] sm:$0xff]
    %v63 = vld [vmem:[#allocation2 + $0xb8] sm:$0xff]
    %v64 = vld [vmem:[#allocation2 + $0xc0] sm:$0xff]
    %v65 = vld [vmem:[#allocation2 + $0xc8] sm:$0xff]
    %v66 = vld [vmem:[#allocation2 + $0xd0] sm:$0xff]
    %v67 = vld [vmem:[#allocation2 + $0xd8] sm:$0xff]
    %v68 = vld [vmem:[#allocation2 + $0xe0] sm:$0xff]
    %v69 = vld [vmem:[#allocation2 + $0xe8] sm:$0xff]
    %v70 = vld [vmem:[#allocation2 + $0xf0] sm:$0xff]
    %v71 = vld [vmem:[#allocation2 + $0xf8] sm:$0xff]
    %v72 = vld [vmem:[#allocation2 + $0x100] sm:$0xff]
    %v73 = vld [vmem:[#allocation2 + $0x108] sm:$0xff]
    %v74 = vld [vmem:[#allocation2 + $0x110] sm:$0xff]
    %v75 = vld [vmem:[#allocation2 + $0x118] sm:$0xff]
    %v76 = vld [vmem:[#allocation2 + $0x120] sm:$0xff]
    %v77 = vld [vmem:[#allocation2 + $0x128] sm:$0xff]
    %v78 = vld [vmem:[#allocation2 + $0x130] sm:$0xff]
    %v79 = vld [vmem:[#allocation2 + $0x138] sm:$0xff]
    %v80 = vld [vmem:[#allocation2 + $0x140] sm:$0xff]
    %v81 = vld [vmem:[#allocation2 + $0x148] sm:$0xff]
    %v82 = vld [vmem:[#allocation2 + $0x150] sm:$0xff]
    %v83 = vld [vmem:[#allocation2 + $0x158] sm:$0xff]
    %v84 = vld [vmem:[#allocation2 + $0x160] sm:$0xff]
    %v85 = vld [vmem:[#allocation2 + $0x168] sm:$0xff]
    %v86 = vld [vmem:[#allocation2 + $0x170] sm:$0xff]
    %v87 = vld [vmem:[#allocation2 + $0x178] sm:$0xff]
    %v88 = vld [vmem:[#allocation2 + $0x180] sm:$0xff]
    %v89 = vld [vmem:[#allocation2 + $0x188] sm:$0xff]
    %v90 = vld [vmem:[#allocation2 + $0x190] sm:$0xff]
    %v91 = vld [vmem:[#allocation2 + $0x198] sm:$0xff]
    %v92 = vld [vmem:[#allocation2 + $0x1a0] sm:$0xff]
    %v93 = vld [vmem:[#allocation2 + $0x1a8] sm:$0xff]
    %v94 = vld [vmem:[#allocation2 + $0x1b0] sm:$0xff]
    %v95 = vld [vmem:[#allocation2 + $0x1b8] sm:$0xff]
    %v96 = vld [vmem:[#allocation2 + $0x1c0] sm:$0xff]
    %v97 = vld [vmem:[#allocation2 + $0x1c8] sm:$0xff]
    %v98 = vld [vmem:[#allocation2 + $0x1d0] sm:$0xff]
    %v99 = vld [vmem:[#allocation2 + $0x1d8] sm:$0xff]
    %v100 = vld [vmem:[#allocation2 + $0x1e0] sm:$0xff]
    %v101 = vld [vmem:[#allocation2 + $0x1e8] sm:$0x3]
    %v102 = vld [vmem:[#allocation5] sm:$0xff]
    %v103 = vld [vmem:[#allocation5 + $0x8] sm:$0xff]
    %v104 = vld [vmem:[#allocation5 + $0x10] sm:$0xff]
    %v105 = vld [vmem:[#allocation5 + $0x18] sm:$0xff]
    %v106 = vld [vmem:[#allocation5 + $0x20] sm:$0xff]
    %v107 = vld [vmem:[#allocation5 + $0x28] sm:$0xff]
    %v108 = vld [vmem:[#allocation5 + $0x30] sm:$0xff]
    %v109 = vld [vmem:[#allocation5 + $0x38] sm:$0xff]
    %v110 = vld [vmem:[#allocation5 + $0x40] sm:$0xff]
    %v111 = vld [vmem:[#allocation5 + $0x48] sm:$0xff]
    %v112 = vld [vmem:[#allocation5 + $0x50] sm:$0xff]
    %v113 = vld [vmem:[#allocation5 + $0x58] sm:$0xff]
    %v114 = vld [vmem:[#allocation5 + $0x60] sm:$0xff]
    %v115 = vld [vmem:[#allocation5 + $0x68] sm:$0xff]
    %v116 = vld [vmem:[#allocation5 + $0x70] sm:$0xff]
    %v117 = vld [vmem:[#allocation5 + $0x78] sm:$0xff]
    %v118 = vld [vmem:[#allocation5 + $0x80] sm:$0xff]
    %v119 = vld [vmem:[#allocation5 + $0x88] sm:$0xff]
    %v120 = vld [vmem:[#allocation5 + $0x90] sm:$0xff]
    %v121 = vld [vmem:[#allocation5 + $0x98] sm:$0xff]
    %v122 = vld [vmem:[#allocation5 + $0xa0] sm:$0xff]
    %v123 = vld [vmem:[#allocation5 + $0xa8] sm:$0xff]
    %v124 = vld [vmem:[#allocation5 + $0xb0] sm:$0xff]
    %v125 = vld [vmem:[#allocation5 + $0xb8] sm:$0xff]
    %v126 = vld [vmem:[#allocation5 + $0xc0] sm:$0xff]
    %v127 = vld [vmem:[#allocation5 + $0xc8] sm:$0xff]
    %v128 = vld [vmem:[#allocation5 + $0xd0] sm:$0xff]
    %v129 = vld [vmem:[#allocation5 + $0xd8] sm:$0xff]
    %v130 = vld [vmem:[#allocation5 + $0xe0] sm:$0xff]
    %v131 = vld [vmem:[#allocation5 + $0xe8] sm:$0xff]
    %v132 = vld [vmem:[#allocation5 + $0xf0] sm:$0xff]
    %v133 = vld [vmem:[#allocation5 + $0xf8] sm:$0xff]
    %v134 = vld [vmem:[#allocation5 + $0x100] sm:$0xff]
    %v135 = vld [vmem:[#allocation5 + $0x108] sm:$0xff]
    %v136 = vld [vmem:[#allocation5 + $0x110] sm:$0xff]
    %v137 = vld [vmem:[#allocation5 + $0x118] sm:$0xff]
    %v138 = vld [vmem:[#allocation5 + $0x120] sm:$0xff]
    %v139 = vld [vmem:[#allocation5 + $0x128] sm:$0xff]
    %v140 = vld [vmem:[#allocation5 + $0x130] sm:$0xff]
    %v141 = vld [vmem:[#allocation5 + $0x138] sm:$0xff]
    %v142 = vld [vmem:[#allocation5 + $0x140] sm:$0xff]
    %v143 = vld [vmem:[#allocation5 + $0x148] sm:$0xff]
    %v144 = vld [vmem:[#allocation5 + $0x150] sm:$0xff]
    %v145 = vld [vmem:[#allocation5 + $0x158] sm:$0xff]
    %v146 = vld [vmem:[#allocation5 + $0x160] sm:$0xff]
    %v147 = vld [vmem:[#allocation5 + $0x168] sm:$0xff]
    %v148 = vld [vmem:[#allocation5 + $0x170] sm:$0xff]
    %v149 = vld [vmem:[#allocation5 + $0x178] sm:$0xff]
    %v150 = vld [vmem:[#allocation5 + $0x180] sm:$0xff]
    %v151 = vld [vmem:[#allocation5 + $0x188] sm:$0xff]
    %v152 = vld [vmem:[#allocation5 + $0x190] sm:$0xff]
    %v153 = vld [vmem:[#allocation5 + $0x198] sm:$0xff]
    %v154 = vld [vmem:[#allocation5 + $0x1a0] sm:$0xff]
    %v155 = vld [vmem:[#allocation5 + $0x1a8] sm:$0xff]
    %v156 = vld [vmem:[#allocation5 + $0x1b0] sm:$0xff]
    %v157 = vld [vmem:[#allocation5 + $0x1b8] sm:$0xff]
    %v158 = vld [vmem:[#allocation5 + $0x1c0] sm:$0xff]
    %v159 = vld [vmem:[#allocation5 + $0x1c8] sm:$0xff]
    %v160 = vld [vmem:[#allocation5 + $0x1d0] sm:$0xff]
    %v161 = vld [vmem:[#allocation5 + $0x1d8] sm:$0xff]
    %v162 = vld [vmem:[#allocation5 + $0x1e0] sm:$0xff]
    %v163 = vld [vmem:[#allocation5 + $0x1e8] sm:$0x3]
    %v164 = vadd.f32 %v40, %v102
    %v165 = vadd.f32 %v41, %v103
    %v166 = vadd.f32 %v42, %v104
    %v167 = vadd.f32 %v43, %v105
    %v168 = vadd.f32 %v44, %v106
    %v169 = vadd.f32 %v45, %v107
    %v170 = vadd.f32 %v46, %v108
    %v171 = vadd.f32 %v47, %v109
    %v172 = vadd.f32 %v48, %v110
    %v173 = vadd.f32 %v49, %v111
    %v174 = vadd.f32 %v50, %v112
    %v175 = vadd.f32 %v51, %v113
    %v176 = vadd.f32 %v52, %v114
    %v177 = vadd.f32 %v53, %v115
    %v178 = vadd.f32 %v54, %v116
    %v179 = vadd.f32 %v55, %v117
    %v180 = vadd.f32 %v56, %v118
    %v181 = vadd.f32 %v57, %v119
    %v182 = vadd.f32 %v58, %v120
    %v183 = vadd.f32 %v59, %v121
    %v184 = vadd.f32 %v60, %v122
    %v185 = vadd.f32 %v61, %v123
    %v186 = vadd.f32 %v62, %v124
    %v187 = vadd.f32 %v63, %v125
    %v188 = vadd.f32 %v64, %v126
    %v189 = vadd.f32 %v65, %v127
    %v190 = vadd.f32 %v66, %v128
    %v191 = vadd.f32 %v67, %v129
    %v192 = vadd.f32 %v68, %v130
    %v193 = vadd.f32 %v69, %v131
    %v194 = vadd.f32 %v70, %v132
    %v195 = vadd.f32 %v71, %v133
    %v196 = vadd.f32 %v72, %v134
    %v197 = vadd.f32 %v73, %v135
    %v198 = vadd.f32 %v74, %v136
    %v199 = vadd.f32 %v75, %v137
    %v200 = vadd.f32 %v76, %v138
    %v201 = vadd.f32 %v77, %v139
    %v202 = vadd.f32 %v78, %v140
    %v203 = vadd.f32 %v79, %v141
    %v204 = vadd.f32 %v80, %v142
    %v205 = vadd.f32 %v81, %v143
    %v206 = vadd.f32 %v82, %v144
    %v207 = vadd.f32 %v83, %v145
    %v208 = vadd.f32 %v84, %v146
    %v209 = vadd.f32 %v85, %v147
    %v210 = vadd.f32 %v86, %v148
    %v211 = vadd.f32 %v87, %v149
    %v212 = vadd.f32 %v88, %v150
    %v213 = vadd.f32 %v89, %v151
    %v214 = vadd.f32 %v90, %v152
    %v215 = vadd.f32 %v91, %v153
    %v216 = vadd.f32 %v92, %v154
    %v217 = vadd.f32 %v93, %v155
    %v218 = vadd.f32 %v94, %v156
    %v219 = vadd.f32 %v95, %v157
    %v220 = vadd.f32 %v96, %v158
    %v221 = vadd.f32 %v97, %v159
    %v222 = vadd.f32 %v98, %v160
    %v223 = vadd.f32 %v99, %v161
    %v224 = vadd.f32 %v100, %v162
    %v225 = vadd.f32 %v101, %v163
    %226 = vst [vmem:[#allocation7] sm:$0xff] %v164
    %227 = vst [vmem:[#allocation7 + $0x8] sm:$0xff] %v165
    %228 = vst [vmem:[#allocation7 + $0x10] sm:$0xff] %v166
    %229 = vst [vmem:[#allocation7 + $0x18] sm:$0xff] %v167
    %230 = vst [vmem:[#allocation7 + $0x20] sm:$0xff] %v168
    %231 = vst [vmem:[#allocation7 + $0x28] sm:$0xff] %v169
    %232 = vst [vmem:[#allocation7 + $0x30] sm:$0xff] %v170
    %233 = vst [vmem:[#allocation7 + $0x38] sm:$0xff] %v171
    %234 = vst [vmem:[#allocation7 + $0x40] sm:$0xff] %v172
    %235 = vst [vmem:[#allocation7 + $0x48] sm:$0xff] %v173
    %236 = vst [vmem:[#allocation7 + $0x50] sm:$0xff] %v174
    %237 = vst [vmem:[#allocation7 + $0x58] sm:$0xff] %v175
    %238 = vst [vmem:[#allocation7 + $0x60] sm:$0xff] %v176
    %239 = vst [vmem:[#allocation7 + $0x68] sm:$0xff] %v177
    %240 = vst [vmem:[#allocation7 + $0x70] sm:$0xff] %v178
    %241 = vst [vmem:[#allocation7 + $0x78] sm:$0xff] %v179
    %242 = vst [vmem:[#allocation7 + $0x80] sm:$0xff] %v180
    %243 = vst [vmem:[#allocation7 + $0x88] sm:$0xff] %v181
    %244 = vst [vmem:[#allocation7 + $0x90] sm:$0xff] %v182
    %245 = vst [vmem:[#allocation7 + $0x98] sm:$0xff] %v183
    %246 = vst [vmem:[#allocation7 + $0xa0] sm:$0xff] %v184
    %247 = vst [vmem:[#allocation7 + $0xa8] sm:$0xff] %v185
    %248 = vst [vmem:[#allocation7 + $0xb0] sm:$0xff] %v186
    %249 = vst [vmem:[#allocation7 + $0xb8] sm:$0xff] %v187
    %250 = vst [vmem:[#allocation7 + $0xc0] sm:$0xff] %v188
    %251 = vst [vmem:[#allocation7 + $0xc8] sm:$0xff] %v189
    %252 = vst [vmem:[#allocation7 + $0xd0] sm:$0xff] %v190
    %253 = vst [vmem:[#allocation7 + $0xd8] sm:$0xff] %v191
    %254 = vst [vmem:[#allocation7 + $0xe0] sm:$0xff] %v192
    %255 = vst [vmem:[#allocation7 + $0xe8] sm:$0xff] %v193
    %256 = vst [vmem:[#allocation7 + $0xf0] sm:$0xff] %v194
    %257 = vst [vmem:[#allocation7 + $0xf8] sm:$0xff] %v195
    %258 = vst [vmem:[#allocation7 + $0x100] sm:$0xff] %v196
    %259 = vst [vmem:[#allocation7 + $0x108] sm:$0xff] %v197
    %260 = vst [vmem:[#allocation7 + $0x110] sm:$0xff] %v198
    %261 = vst [vmem:[#allocation7 + $0x118] sm:$0xff] %v199
    %262 = vst [vmem:[#allocation7 + $0x120] sm:$0xff] %v200
    %263 = vst [vmem:[#allocation7 + $0x128] sm:$0xff] %v201
    %264 = vst [vmem:[#allocation7 + $0x130] sm:$0xff] %v202
    %265 = vst [vmem:[#allocation7 + $0x138] sm:$0xff] %v203
    %266 = vst [vmem:[#allocation7 + $0x140] sm:$0xff] %v204
    %267 = vst [vmem:[#allocation7 + $0x148] sm:$0xff] %v205
    %268 = vst [vmem:[#allocation7 + $0x150] sm:$0xff] %v206
    %269 = vst [vmem:[#allocation7 + $0x158] sm:$0xff] %v207
    %270 = vst [vmem:[#allocation7 + $0x160] sm:$0xff] %v208
    %271 = vst [vmem:[#allocation7 + $0x168] sm:$0xff] %v209
    %272 = vst [vmem:[#allocation7 + $0x170] sm:$0xff] %v210
    %273 = vst [vmem:[#allocation7 + $0x178] sm:$0xff] %v211
    %274 = vst [vmem:[#allocation7 + $0x180] sm:$0xff] %v212
    %275 = vst [vmem:[#allocation7 + $0x188] sm:$0xff] %v213
    %276 = vst [vmem:[#allocation7 + $0x190] sm:$0xff] %v214
    %277 = vst [vmem:[#allocation7 + $0x198] sm:$0xff] %v215
    %278 = vst [vmem:[#allocation7 + $0x1a0] sm:$0xff] %v216
    %279 = vst [vmem:[#allocation7 + $0x1a8] sm:$0xff] %v217
    %280 = vst [vmem:[#allocation7 + $0x1b0] sm:$0xff] %v218
    %281 = vst [vmem:[#allocation7 + $0x1b8] sm:$0xff] %v219
    %282 = vst [vmem:[#allocation7 + $0x1c0] sm:$0xff] %v220
    %283 = vst [vmem:[#allocation7 + $0x1c8] sm:$0xff] %v221
    %284 = vst [vmem:[#allocation7 + $0x1d0] sm:$0xff] %v222
    %285 = vst [vmem:[#allocation7 + $0x1d8] sm:$0xff] %v223
    %286 = vst [vmem:[#allocation7 + $0x1e0] sm:$0xff] %v224
    %287 = vst [vmem:[#allocation7 + $0x1e8] sm:$0x3] %v225
    // Predicated region
    $region18: #{tpu_custom_call.1} parent=1 // pred_check
      _
    $region19: #{tpu_custom_call.1} parent=1 // pred_check_branch
      %289 = sbr.rel (0) target = $region21
    $region20: #{tpu_custom_call.1} parent=1 // pred_region
      %s291 = ssub.s32 7936, 7936
      %292 = vsyncadd [#allocation4], %s291
      %s293 = sshll.u32 [#allocation7], 4
      %s294 = int_to_ptr.vmem [resolvable:$true] %s293
      %299 = dma.vmem_to_hbm [thread:$0]  %s294, 7936, %s2, [#allocation4], 128, 128, 8
    $region21: #{tpu_custom_call.1} parent=1 // pred_fallthru
      _
    // Predicated region
    $region22: #{tpu_custom_call.1} parent=1 // pred_check
      _
    $region23: #{tpu_custom_call.1} parent=1 // pred_check_branch
      %301 = sbr.rel (0) target = $region25
    $region24: #{tpu_custom_call.1} parent=1 // pred_region
      %302 = dma.done [#allocation4], 7936
    $region25: #{tpu_custom_call.1} parent=1 // pred_fallthru
      _
    %303 = vsyncpa [#allocation3], 1
    %304 = vsyncpa [#allocation6], 1
    %305 = vsyncpa [#allocation4], 1

</llo_original>
